<compile_context>
chip_gen: v7x
topology: tpu7x:2x2x1
jax: 0.10.0
libtpu: 0.0.40
codegen_flags: <defaults>
</compile_context>

<pallas_src>
import functools

import jax
import jax.numpy as jnp
from jax import lax
from jax.experimental import pallas as pl
from jax.experimental.pallas import tpu as pltpu

_SUBLANES = 8
_LANES = 128


def _round_up(x, m):
    return (x + m - 1) // m * m


def _cdiv(a, b):
    return (a + b - 1) // b


def _stable_log_sigmoid(x):
    # log(sigmoid(x)) = min(x, 0) - log1p(exp(-|x|)); stable for large |x|.
    return jnp.minimum(x, 0.0) - jnp.log1p(jnp.exp(-jnp.abs(x)))


def _chip_defaults():
    """(block_bytes_per_input, num_parallel_parts) per TPU generation."""
    kind = ""
    try:
        kind = jax.devices()[0].device_kind.lower()
    except Exception:
        pass
    if "v7" in kind:        # 2 TensorCores, 64 MiB VMEM, ~3.2 TB/s HBM
        return 8 << 20, 2
    if "v6" in kind:        # 1 TensorCore, 128 MiB VMEM, ~1.4 TB/s HBM
        return 12 << 20, 1
    return 4 << 20, 1       # v5e & unknown: 4 MiB blocks are already ~roofline


def _bpr_partial_kernel(pos_ref, neg_ref, part_ref, *, steps, tile_m, chunk_m,
                        n_rows, row_gran, needs_row_mask):
    """Accumulate sum(log_sigmoid(pos - neg)) of this row-tile into part_ref."""
    s = pl.program_id(1)

    @pl.when(s == 0)
    def _():
        part_ref[...] = jnp.zeros_like(part_ref)

    def chunk_sum(r0, rows, masked):
        pos = pos_ref[pl.ds(r0, rows), :].astype(jnp.float32)
        neg = neg_ref[pl.ds(r0, rows), :].astype(jnp.float32)
        ls = _stable_log_sigmoid(pos - neg)
        if masked:
            base = (pl.program_id(0) * steps + s) * tile_m + r0
            rid = lax.broadcasted_iota(jnp.int32, (rows, _LANES), 0) + base
            # Select (not multiply): OOB garbage rows may hold NaN/Inf.
            ls = jnp.where(rid < n_rows, ls, 0.0)
        # Layout-preserving fold into one (8,128) vreg: pure VPU adds; the
        # expensive cross-lane reduce is deferred to the jnp epilogue.
        return ls.reshape(rows // _SUBLANES, _SUBLANES, _LANES).sum(axis=0)

    n_full = tile_m // chunk_m
    rem = tile_m - n_full * chunk_m

    def tile_sum(masked):
        # Strip-mine so elementwise temporaries stay ~1 MiB (bounds VMEM
        # footprint; keeps vst/vld off the single v5e store slot).
        acc = jnp.zeros((_SUBLANES, _LANES), jnp.float32)
        if n_full > 0:
            def body(c, a):
                r0 = pl.multiple_of(c * chunk_m, row_gran)
                return a + chunk_sum(r0, chunk_m, masked)
            acc = lax.fori_loop(0, n_full, body, acc, unroll=True)
        if rem > 0:
            acc = acc + chunk_sum(n_full * chunk_m, rem, masked)
        return acc

    if needs_row_mask:
        row0 = (pl.program_id(0) * steps + s) * tile_m
        interior = row0 + tile_m <= n_rows

        @pl.when(interior)                     # interior tiles: no mask work
        def _():
            part_ref[...] += tile_sum(False)

        @pl.when(jnp.logical_not(interior))    # only boundary tile(s) mask
        def _():
            part_ref[...] += tile_sum(True)
    else:
        part_ref[...] += tile_sum(False)


def bpr_loss(pos_scores, neg_scores, *, block_bytes=None, num_parallel=None):
    """Pallas BPR loss: -mean(log(sigmoid(pos_scores - neg_scores)))."""
    assert pos_scores.shape == neg_scores.shape, "pos/neg shapes must match"

    auto_bytes, auto_par = _chip_defaults()
    block_bytes = auto_bytes if block_bytes is None else block_bytes
    num_parallel = auto_par if num_parallel is None else num_parallel

    # Element-count-based flat view: free contiguous reshapes, no pad copies.
    pos_flat = pos_scores.reshape(-1)
    neg_flat = neg_scores.reshape(-1)
    total = pos_flat.shape[0]
    if total == 0:
        return jnp.float32(jnp.nan)

    t_main = (total // _LANES) * _LANES
    tail = total - t_main

    itemsize = jnp.dtype(pos_flat.dtype).itemsize
    row_gran = _SUBLANES * max(1, 4 // itemsize)       # f32: 8, bf16: 16, i8: 32

    main_sum = jnp.float32(0.0)
    if t_main > 0:
        M = t_main // _LANES
        if tail:
            # Uncommon case (#elements not a multiple of 128): prefix slice.
            pos2 = pos_flat[:t_main].reshape(M, _LANES)
            neg2 = neg_flat[:t_main].reshape(M, _LANES)
        else:
            pos2 = pos_flat.reshape(M, _LANES)
            neg2 = neg_flat.reshape(M, _LANES)

        P = num_parallel if M >= num_parallel * row_gran else 1
        rows_fit = max(row_gran,
                       (block_bytes // (_LANES * itemsize)) // row_gran * row_gran)
        rows_per_part = _cdiv(M, P)
        tile_m = min(rows_fit, _round_up(rows_per_part, row_gran))
        steps = _cdiv(rows_per_part, tile_m)
        covered = P * steps * tile_m
        needs_row_mask = covered != M

        # ~1 MiB (f32) strip-mine chunks inside the tile.
        chunk_m = max(row_gran,
                      ((1 << 20) // (_LANES * 4)) // row_gran * row_gran)
        chunk_m = min(chunk_m, tile_m)

        last_block = _cdiv(M, tile_m) - 1

        def in_index_map(p, s):
            # Clamp so a (rare) fully-out-of-range tile just re-reads the last
            # block; its contribution is zeroed by the logical-row mask.
            return (jnp.minimum(p * steps + s, last_block), 0)

        kernel = functools.partial(
            _bpr_partial_kernel, steps=steps, tile_m=tile_m, chunk_m=chunk_m,
            n_rows=M, row_gran=row_gran, needs_row_mask=needs_row_mask)

        block_in_bytes = tile_m * _LANES * itemsize
        cost = pl.CostEstimate(
            flops=6 * t_main,
            transcendentals=2 * t_main,
            bytes_accessed=2 * t_main * itemsize + P * _SUBLANES * _LANES * 4)

        partials = pl.pallas_call(
            kernel,
            out_shape=jax.ShapeDtypeStruct((P, _SUBLANES, _LANES), jnp.float32),
            grid_spec=pltpu.PrefetchScalarGridSpec(
                num_scalar_prefetch=0,
                grid=(P, steps),
                in_specs=[pl.BlockSpec((tile_m, _LANES), in_index_map),
                          pl.BlockSpec((tile_m, _LANES), in_index_map)],
                # One resident (8,128) accumulator block per parallel part;
                # block index constant across the "arbitrary" row-step axis.
                out_specs=pl.BlockSpec((None, _SUBLANES, _LANES),
                                       lambda p, s: (p, 0, 0)),
            ),
            compiler_params=pltpu.CompilerParams(
                dimension_semantics=("parallel", "arbitrary"),
                # 2 inputs x 2 buffers x block + headroom for temporaries.
                vmem_limit_bytes=int(4 * block_in_bytes + (8 << 20)),
            ),
            cost_estimate=cost,
        )(pos2, neg2)
        main_sum = jnp.sum(partials)

    if tail:
        d = (pos_flat[t_main:].astype(jnp.float32)
             - neg_flat[t_main:].astype(jnp.float32))
        main_sum = main_sum + jnp.sum(_stable_log_sigmoid(d))

    # Tiny epilogue: cross-lane/cross-part reduce, negate, mean.
    return -main_sum / jnp.float32(total)


if __name__ == "__main__":
    key = jax.random.PRNGKey(0)
    k1, k2 = jax.random.split(key)

    # Small score tensors: batch of 16 users, 256 candidate scores each.
    pos_scores = jax.random.normal(k1, (16, 256), dtype=jnp.float32)
    neg_scores = jax.random.normal(k2, (16, 256), dtype=jnp.float32)

    loss = bpr_loss(pos_scores, neg_scores)
    loss = jax.block_until_ready(loss)

    # Pure-JAX reference (same math as the torch module).
    ref = -jnp.mean(jax.nn.log_sigmoid(pos_scores - neg_scores))
    assert jnp.allclose(loss, ref, rtol=1e-5, atol=1e-5), (loss, ref)

    print("KERNEL_OK")
</pallas_src>

<mosaic_0001>
module attributes {stable_mosaic.version = 11 : i64} {
  func.func @_bpr_partial_kernel(%arg0: i32, %arg1: i32, %arg2: memref<32x128xf32, #tpu.memory_space<vmem>>, %arg3: memref<32x128xf32, #tpu.memory_space<vmem>>, %arg4: memref<1x8x128xf32, #tpu.memory_space<vmem>>) attributes {dimension_semantics = [#tpu.dimension_semantics<parallel>, #tpu.dimension_semantics<arbitrary>], iteration_bounds = array<i64: 1, 1>, scalar_prefetch = 0 : i64, scratch_operands = 0 : i64, tpu.core_type = #tpu.core_type<tc>, window_params = [{transform_indices = @transform_0, window_bounds = array<i64: 32, 128>}, {transform_indices = @transform_1, window_bounds = array<i64: 32, 128>}, {transform_indices = @transform_2, window_bounds = array<i64: 1, 8, 128>}]} {
    %c0_i32 = arith.constant 0 : i32
    %0 = arith.cmpi eq, %arg1, %c0_i32 : i32
    %1 = arith.extui %0 : i1 to i32
    %c0_i32_0 = arith.constant 0 : i32
    %2 = arith.cmpi ne, %1, %c0_i32_0 : i32
    scf.if %2 {
      %cst_12 = arith.constant 0.000000e+00 : f32
      %28 = vector.broadcast %cst_12 : f32 to vector<8x128xf32>
      %c0_13 = arith.constant 0 : index
      %c0_14 = arith.constant 0 : index
      %c0_15 = arith.constant 0 : index
      %29 = vector.load %arg4[%c0_13, %c0_14, %c0_15] : memref<1x8x128xf32, #tpu.memory_space<vmem>>, vector<1x8x128xf32>
      %30 = vector.shape_cast %29 : vector<1x8x128xf32> to vector<8x128xf32>
      %31 = vector.shape_cast %28 : vector<8x128xf32> to vector<1x8x128xf32>
      tpu.vector_store %arg4[%c0_13, %c0_14, %c0_15], %31 {strides = array<i32>} : memref<1x8x128xf32, #tpu.memory_space<vmem>>, vector<1x8x128xf32>,
    } else {
    }
    %c0 = arith.constant 0 : index
    %c0_1 = arith.constant 0 : index
    %c0_2 = arith.constant 0 : index
    %3 = vector.load %arg4[%c0, %c0_1, %c0_2] : memref<1x8x128xf32, #tpu.memory_space<vmem>>, vector<1x8x128xf32>
    %4 = vector.shape_cast %3 : vector<1x8x128xf32> to vector<8x128xf32>
    %cst = arith.constant 0.000000e+00 : f32
    %5 = vector.broadcast %cst : f32 to vector<8x128xf32>
    %c0_i32_3 = arith.constant 0 : i32
    %c32_i32 = arith.constant 32 : i32
    %6 = arith.muli %c0_i32_3, %c32_i32 : i32
    %7 = tpu.assume_multiple %6, 8 : i32
    %8 = arith.index_cast %7 : i32 to index
    %c0_4 = arith.constant 0 : index
    %9 = vector.load %arg2[%8, %c0_4] : memref<32x128xf32, #tpu.memory_space<vmem>>, vector<32x128xf32>
    %10 = arith.index_cast %7 : i32 to index
    %c0_5 = arith.constant 0 : index
    %11 = vector.load %arg3[%10, %c0_5] : memref<32x128xf32, #tpu.memory_space<vmem>>, vector<32x128xf32>
    %12 = arith.subf %9, %11 : vector<32x128xf32>
    %cst_6 = arith.constant 0.000000e+00 : f32
    %13 = vector.broadcast %cst_6 : f32 to vector<32x128xf32>
    %14 = arith.minimumf %12, %13 : vector<32x128xf32>
    %15 = math.absf %12 : vector<32x128xf32>
    %cst_7 = arith.constant 0.000000e+00 : f32
    %16 = vector.broadcast %cst_7 : f32 to vector<32x128xf32>
    %17 = arith.subf %16, %15 : vector<32x128xf32>
    %18 = math.exp %17 : vector<32x128xf32>
    %19 = math.log1p %18 : vector<32x128xf32>
    %20 = arith.subf %14, %19 : vector<32x128xf32>
    %21 = vector.shape_cast %20 : vector<32x128xf32> to vector<4x8x128xf32>
    %cst_8 = arith.constant dense<0.000000e+00> : vector<8x128xf32>
    %22 = vector.multi_reduction <add>, %21, %cst_8 [0] : vector<4x8x128xf32> to vector<8x128xf32>
    %23 = arith.addf %5, %22 : vector<8x128xf32>
    %c1_i32 = arith.constant 1 : i32
    %24 = arith.addf %4, %23 : vector<8x128xf32>
    %c0_9 = arith.constant 0 : index
    %c0_10 = arith.constant 0 : index
    %c0_11 = arith.constant 0 : index
    %25 = vector.load %arg4[%c0_9, %c0_10, %c0_11] : memref<1x8x128xf32, #tpu.memory_space<vmem>>, vector<1x8x128xf32>
    %26 = vector.shape_cast %25 : vector<1x8x128xf32> to vector<8x128xf32>
    %27 = vector.shape_cast %24 : vector<8x128xf32> to vector<1x8x128xf32>
    tpu.vector_store %arg4[%c0_9, %c0_10, %c0_11], %27 {strides = array<i32>} : memref<1x8x128xf32, #tpu.memory_space<vmem>>, vector<1x8x128xf32>,
    return
  }
  func.func @transform_0(%arg0: i32, %arg1: i32) -> (i32, i32) {
    %c1_i32 = arith.constant 1 : i32
    %0 = arith.muli %arg0, %c1_i32 : i32
    %1 = arith.addi %0, %arg1 : i32
    %c0_i32 = arith.constant 0 : i32
    %2 = arith.minsi %1, %c0_i32 : i32
    %c0_i32_0 = arith.constant 0 : i32
    %c0_i32_1 = arith.constant 0 : i32
    return %2, %c0_i32_0 : i32, i32
  }
  func.func @transform_1(%arg0: i32, %arg1: i32) -> (i32, i32) {
    %c1_i32 = arith.constant 1 : i32
    %0 = arith.muli %arg0, %c1_i32 : i32
    %1 = arith.addi %0, %arg1 : i32
    %c0_i32 = arith.constant 0 : i32
    %2 = arith.minsi %1, %c0_i32 : i32
    %c0_i32_0 = arith.constant 0 : i32
    %c0_i32_1 = arith.constant 0 : i32
    return %2, %c0_i32_0 : i32, i32
  }
  func.func @transform_2(%arg0: i32, %arg1: i32) -> (i32, i32, i32) {
    %c0_i32 = arith.constant 0 : i32
    %c0_i32_0 = arith.constant 0 : i32
    %c0_i32_1 = arith.constant 0 : i32
    return %arg0, %c0_i32, %c0_i32_0 : i32, i32, i32
  }
}

</mosaic_0001>

<llo_original>
// kernel: tpu_custom_call.1
$region0: #{tpu_custom_call.1}
  #allocation0 [shape = 'u32[]', space=smem, size = 0x4, offset = 0x4, fixed_abs, tag = 'smem constant byte address 0x4 - core index']
  #allocation1 [shape = 'u32[144,128]{1,0:T(1,128)}', space=vmem, size = 0x12000, scoped, tag = 'internal scratch']
  %s0 = inlined_call_operand.hbm [shape: f32[32,128], index: 0, kind: input, shape index: {}]
  %s1 = inlined_call_operand.hbm [shape: f32[32,128], index: 1, kind: input, shape index: {}]
  %s2 = inlined_call_operand.hbm [shape: f32[1,8,128], index: 2, kind: output, shape index: {}]
  %s3 = sld [smem:[#allocation0]]
  $region30: #{tpu_custom_call.1} parent=0
    _
  %s5 = ssub.s32 1, %s3
  %s6 = scalar_select 0, %s5, %s3
  $region1: #{tpu_custom_call.1} parent=0
    #allocation2 [shape = 'u8[16384]{0}', space=vmem, size = 0x4000, scoped, tag = 'input window, operand 0, single buffered']
    #allocation3 [shape = 's32[1]{0}', space=sflag, size = 0x4, scoped, tag = 'scoped memory for tpu_custom_call.1']
    #allocation4 [shape = 's32[1]{0}', space=sflag, size = 0x4, scoped, tag = 'scoped memory for tpu_custom_call.1']
    #allocation5 [shape = 'u8[16384]{0}', space=vmem, size = 0x4000, scoped, tag = 'input window, operand 1, single buffered']
    #allocation6 [shape = 's32[1]{0}', space=sflag, size = 0x4, scoped, tag = 'scoped memory for tpu_custom_call.1']
    #allocation7 [shape = 'u8[4096]{0}', space=vmem, size = 0x1000, scoped, tag = 'output window, operand 0, single buffered']
    %7 = vsyncpa [#allocation3], 0
    %8 = vsyncpa [#allocation6], 0
    %9 = vsyncpa [#allocation4], 0
    // Predicated region
    $region2: #{tpu_custom_call.1} parent=1 // pred_check
      _
    $region3: #{tpu_custom_call.1} parent=1 // pred_check_branch
      %11 = sbr.rel (0) target = $region5
    $region4: #{tpu_custom_call.1} parent=1 // pred_region
      %s12 = sadd.s32 0, 0
      %p13 = scmp.lt.s32.totalorder %s12, 0
      %s14 = scalar_select %p13, %s12, 0
      %s15 = smul.u32 4, %s14
      %s17 = ssub.s32 512, 512
      %18 = vsyncadd [#allocation3], %s17
      %s19 = smul.addr %s15, 128
      %s20 = scalar_lea.hbm %s0, %s19
      %s21 = sshll.u32 [#allocation2], 4
      %s22 = int_to_ptr.vmem [resolvable:$true] %s21
      %27 = dma.hbm_to_vmem [thread:$0]  %s20, 512, %s22, [#allocation3], 128, 128, 8
    $region5: #{tpu_custom_call.1} parent=1 // pred_fallthru
      _
    // Predicated region
    $region6: #{tpu_custom_call.1} parent=1 // pred_check
      _
    $region7: #{tpu_custom_call.1} parent=1 // pred_check_branch
      %29 = sbr.rel (0) target = $region9
    $region8: #{tpu_custom_call.1} parent=1 // pred_region
      %s30 = sadd.s32 0, 0
      %p31 = scmp.lt.s32.totalorder %s30, 0
      %s32 = scalar_select %p31, %s30, 0
      %s33 = smul.u32 4, %s32
      %s35 = ssub.s32 512, 512
      %36 = vsyncadd [#allocation6], %s35
      %s37 = smul.addr %s33, 128
      %s38 = scalar_lea.hbm %s1, %s37
      %s39 = sshll.u32 [#allocation5], 4
      %s40 = int_to_ptr.vmem [resolvable:$true] %s39
      %45 = dma.hbm_to_vmem [thread:$0]  %s38, 512, %s40, [#allocation6], 128, 128, 8
    $region9: #{tpu_custom_call.1} parent=1 // pred_fallthru
      _
    // Predicated region
    $region10: #{tpu_custom_call.1} parent=1 // pred_check
      _
    $region11: #{tpu_custom_call.1} parent=1 // pred_check_branch
      %47 = sbr.rel (0) target = $region13
    $region12: #{tpu_custom_call.1} parent=1 // pred_region
      %48 = dma.done [#allocation3], 512
    $region13: #{tpu_custom_call.1} parent=1 // pred_fallthru
      _
    // Predicated region
    $region14: #{tpu_custom_call.1} parent=1 // pred_check
      _
    $region15: #{tpu_custom_call.1} parent=1 // pred_check_branch
      %50 = sbr.rel (0) target = $region17
    $region16: #{tpu_custom_call.1} parent=1 // pred_region
      %51 = dma.done [#allocation6], 512
    $region17: #{tpu_custom_call.1} parent=1 // pred_fallthru
      _
    %s52 = sadd.s32 0, 0
    %p53 = scmp.lt.s32.totalorder %s52, 0
    %s54 = scalar_select %p53, %s52, 0
    %s55 = smul.u32 4, %s54
    %s56 = sadd.s32 0, 0
    %p57 = scmp.lt.s32.totalorder %s56, 0
    %s58 = scalar_select %p57, %s56, 0
    %s59 = smul.u32 4, %s58
    %p60 = scmp.eq.s32.totalorder 0, 0
    // Predicated region
    $region18: #{tpu_custom_call.1} parent=1 // pred_check
      %p61 = pneg %p60
    $region19: #{tpu_custom_call.1} parent=1 // pred_check_branch
      %63 = sbr.rel (%p61) target = $region21
    $region20: #{tpu_custom_call.1} parent=1 // pred_region
      %64 = vst [vmem:[#allocation7] sm:$0xff] 0.0
    $region21: #{tpu_custom_call.1} parent=1 // pred_fallthru
      _
    %v65 = vld [vmem:[#allocation7] sm:$0xff]
    %v66 = vld [vmem:[#allocation2] sm:$0xff]
    %v67 = vld [vmem:[#allocation2 + $0x8] sm:$0xff]
    %v68 = vld [vmem:[#allocation2 + $0x10] sm:$0xff]
    %v69 = vld [vmem:[#allocation2 + $0x18] sm:$0xff]
    %v70 = vld [vmem:[#allocation5] sm:$0xff]
    %v71 = vld [vmem:[#allocation5 + $0x8] sm:$0xff]
    %v72 = vld [vmem:[#allocation5 + $0x10] sm:$0xff]
    %v73 = vld [vmem:[#allocation5 + $0x18] sm:$0xff]
    %v74 = vsub.f32 %v66, %v70
    %v75 = vsub.f32 %v67, %v71
    %v76 = vsub.f32 %v68, %v72
    %v77 = vsub.f32 %v69, %v73
    %v78 = vmin.f32 %v74, 0.0
    %v79 = vmin.f32 %v75, 0.0
    %v80 = vmin.f32 %v76, 0.0
    %v81 = vmin.f32 %v77, 0.0
    %v82 = vand.u32 2147483647, %v74
    %v83 = vand.u32 2147483647, %v75
    %v84 = vand.u32 2147483647, %v76
    %v85 = vand.u32 2147483647, %v77
    %v86 = vsub.f32 0.0, %v82
    %v87 = vsub.f32 0.0, %v83
    %v88 = vsub.f32 0.0, %v84
    %v89 = vsub.f32 0.0, %v85
    %v90 = vmul.f32 %v86, 1.442695
    %v91 = vpow.pop %v90
    %v92 = vmul.f32 %v87, 1.442695
    %v93 = vpow.pop %v92
    %v94 = vmul.f32 %v88, 1.442695
    %v95 = vpow.pop %v94
    %v96 = vmul.f32 %v89, 1.442695
    %v97 = vpow.pop %v96
    %v98 = vadd.f32 %v91, 1.0
    %v99 = vlog2.pop %v98
    %v100 = vmul.f32 %v99, 0.6931472
    %v101 = vmul.f32 -0.5, %v91
    %v102 = vadd.f32 %v101, 1.0
    %v103 = vmul.f32 %v102, %v91
    %v104 = vand.u32 2147483647, %v91
    %vm105 = vcmp.lt.f32.partialorder %v104, 0.0004427343
    %v106 = vsel %vm105, %v103, %v100
    %v107 = vadd.f32 %v93, 1.0
    %v108 = vlog2.pop %v107
    %v109 = vmul.f32 %v108, 0.6931472
    %v110 = vmul.f32 -0.5, %v93
    %v111 = vadd.f32 %v110, 1.0
    %v112 = vmul.f32 %v111, %v93
    %v113 = vand.u32 2147483647, %v93
    %vm114 = vcmp.lt.f32.partialorder %v113, 0.0004427343
    %v115 = vsel %vm114, %v112, %v109
    %v116 = vadd.f32 %v95, 1.0
    %v117 = vlog2.pop %v116
    %v118 = vmul.f32 %v117, 0.6931472
    %v119 = vmul.f32 -0.5, %v95
    %v120 = vadd.f32 %v119, 1.0
    %v121 = vmul.f32 %v120, %v95
    %v122 = vand.u32 2147483647, %v95
    %vm123 = vcmp.lt.f32.partialorder %v122, 0.0004427343
    %v124 = vsel %vm123, %v121, %v118
    %v125 = vadd.f32 %v97, 1.0
    %v126 = vlog2.pop %v125
    %v127 = vmul.f32 %v126, 0.6931472
    %v128 = vmul.f32 -0.5, %v97
    %v129 = vadd.f32 %v128, 1.0
    %v130 = vmul.f32 %v129, %v97
    %v131 = vand.u32 2147483647, %v97
    %vm132 = vcmp.lt.f32.partialorder %v131, 0.0004427343
    %v133 = vsel %vm132, %v130, %v127
    %v134 = vsub.f32 %v78, %v106
    %v135 = vsub.f32 %v79, %v115
    %v136 = vsub.f32 %v80, %v124
    %v137 = vsub.f32 %v81, %v133
    %v138 = vadd.f32 %v134, %v135
    %v139 = vadd.f32 %v138, %v136
    %v140 = vadd.f32 %v139, %v137
    %v141 = vadd.f32 %v140, 0.0
    %v142 = vadd.f32 %v65, %v141
    %143 = vst [vmem:[#allocation7] sm:$0xff] %v142
    // Predicated region
    $region22: #{tpu_custom_call.1} parent=1 // pred_check
      _
    $region23: #{tpu_custom_call.1} parent=1 // pred_check_branch
      %145 = sbr.rel (0) target = $region25
    $region24: #{tpu_custom_call.1} parent=1 // pred_region
      %s147 = ssub.s32 128, 128
      %148 = vsyncadd [#allocation4], %s147
      %s150 = sshll.u32 [#allocation7], 4
      %s151 = int_to_ptr.vmem [resolvable:$true] %s150
      %153 = dma.vmem_to_hbm [thread:$0]  %s151, 128, %s2, [#allocation4]
    $region25: #{tpu_custom_call.1} parent=1 // pred_fallthru
      _
    // Predicated region
    $region26: #{tpu_custom_call.1} parent=1 // pred_check
      _
    $region27: #{tpu_custom_call.1} parent=1 // pred_check_branch
      %155 = sbr.rel (0) target = $region29
    $region28: #{tpu_custom_call.1} parent=1 // pred_region
      %156 = dma.done [#allocation4], 128
    $region29: #{tpu_custom_call.1} parent=1 // pred_fallthru
      _
    %157 = vsyncpa [#allocation3], 1
    %158 = vsyncpa [#allocation6], 1
    %159 = vsyncpa [#allocation4], 1

</llo_original>
